<compile_context>
chip_gen: v7x
topology: tpu7x:2x2x1
jax: 0.10.0
libtpu: 0.0.40
codegen_flags: <defaults>
</compile_context>

<pallas_src>
import functools

import jax
import jax.numpy as jnp
from jax import lax
from jax.experimental import pallas as pl
from jax.experimental.pallas import tpu as pltpu

# ---- model hyper-parameters (from the PyTorch module) ----
EMBEDDING_SIZE = 4
HIDDEN_SIZE = 4
INPUT_SIZE = 4      # vocab size
NUM_CLASSES = 4
NUM_LAYERS = 1      # single layer GRU

# ---- packed-parameter slab layout (f32, lane width 128, lane-0 aligned) ----
#   rows  0:4   lanes 0:12 -> emb @ W_ih^T      (V, 3H)   gate order r|z|n
#   rows  8:12  lanes 0:12 -> W_hh^T            (H, 3H)
#   rows 16:20  lanes 0:4  -> W_fc^T            (H, C)
#   row  24     lanes 0:12 -> [b_ir+b_hr | b_iz+b_hz | b_in]
#   row  25     lanes 0:4  -> b_hn
#   row  26     lanes 0:4  -> b_fc
#   rows 32:32+B*T lane 0  -> token ids (time-major, exact small f32 values)
_PACK_COLS = 128
_PARAM_ROWS = 32
_ROW_EMB = 0
_ROW_WHH = 8
_ROW_WFC = 16
_ROW_BI = 24
_ROW_BHN = 25
_ROW_BFC = 26
_ROW_IDS = 32


def gru_model_kernel(p_ref, out_ref, *, B, T):
    V, H, C = INPUT_SIZE, HIDDEN_SIZE, NUM_CLASSES
    G = 3 * H
    TB = B * T

    # ---- unpack (every block starts at lane 0 / its own sublane group) ----
    emb_ih = p_ref[_ROW_EMB:_ROW_EMB + V, 0:G]          # (V, 3H)  emb folded into W_ih
    whh = p_ref[_ROW_WHH:_ROW_WHH + H, 0:G]             # (H, 3H)  W_hh^T (gates fused)
    wfc = p_ref[_ROW_WFC:_ROW_WFC + H, 0:C]             # (H, C)
    b_i = p_ref[_ROW_BI:_ROW_BI + 1, 0:G]               # (1, 3H)  r/z hidden biases folded
    b_hn = p_ref[_ROW_BHN:_ROW_BHN + 1, 0:H]            # (1, H)
    b_fc = p_ref[_ROW_BFC:_ROW_BFC + 1, 0:C]            # (1, C)

    # ---- token ids (time-major column, packed into the same slab) ----
    ids = p_ref[_ROW_IDS:_ROW_IDS + TB, 0:1].astype(jnp.int32)      # (T*B, 1)

    # ---- hoisted non-recurrent work: embedding + fused input projection ----
    # Out-of-range ids silently map to a zero embedding row (PyTorch would raise).
    onehot = (ids == lax.broadcasted_iota(jnp.int32, (TB, V), 1)).astype(jnp.float32)
    xproj = jnp.dot(onehot, emb_ih, preferred_element_type=jnp.float32) + b_i  # (T*B, 3H)

    # Loop-invariant broadcast of W_hh^T rows so the recurrence stays on the VPU.
    whh_rows = [jnp.broadcast_to(whh[k:k + 1, :], (B, G)) for k in range(H)]

    h = jnp.zeros((B, H), jnp.float32)                  # h_0 = zeros(num_layers, B, H)
    hs = []                                             # hidden history lives in vregs
    for t in range(T):                                  # static unroll (T compile-time)
        xp_t = xproj[t * B:(t + 1) * B, :]              # adjacent-sublane static slice

        # h @ W_hh^T on the VPU: H broadcast multiply-adds (no MXU round-trip).
        hh = h[:, 0:1] * whh_rows[0]
        for k in range(1, H):
            hh = hh + h[:, k:k + 1] * whh_rows[k]

        # Fused sigmoid over the r|z slab (single EUP pass); PyTorch gate order r,z,n.
        rz = jax.nn.sigmoid(xp_t[:, 0:2 * H] + hh[:, 0:2 * H])
        r = rz[:, 0:H]
        z = rz[:, H:2 * H]
        n = jnp.tanh(xp_t[:, 2 * H:G] + r * (hh[:, 2 * H:G] + b_hn))
        h = n + z * (h - n)                             # == (1-z)*n + z*h, one op fewer
        hs.append(h)

    # ---- epilogue: assemble batch-major hidden slab, one FC matmul, one store ----
    # Row order b*T + t matches PyTorch's x.view(-1, num_classes).
    hs_bm = jnp.concatenate(
        [hs[t][b:b + 1, :] for b in range(B) for t in range(T)], axis=0)  # (B*T, H)
    out_ref[...] = jnp.dot(hs_bm, wfc, preferred_element_type=jnp.float32) + b_fc


def model_forward(x, param_slab):
    """x: (B, T) integer token ids. Returns (B*T, NUM_CLASSES) float32."""
    B, T = x.shape
    TB = B * T
    TB_pad = -(-TB // 8) * 8

    # Fold the ids into spare rows of the parameter slab -> single kernel input DMA.
    # Time-major order (row t*B + b) so in-kernel per-step slices are contiguous.
    ids_tm = jnp.transpose(x).reshape(TB, 1).astype(jnp.float32)      # exact small ints
    ids_block = jnp.zeros((TB_pad, _PACK_COLS), jnp.float32).at[:TB, 0:1].set(ids_tm)
    slab = jnp.concatenate([param_slab, ids_block], axis=0)           # (32+TB_pad, 128)

    vmem = pl.BlockSpec(memory_space=pltpu.MemorySpace.VMEM)
    out = pl.pallas_call(
        functools.partial(gru_model_kernel, B=B, T=T),
        out_shape=jax.ShapeDtypeStruct((TB, NUM_CLASSES), jnp.float32),
        in_specs=[vmem],
        out_specs=vmem,
    )(slab)
    return out                                          # already matches x.view(-1, C)


def init_torch_params(key):
    """Parameters in the native PyTorch layouts (for the reference + packing)."""
    ks = jax.random.split(key, 7)
    H, E, V, C = HIDDEN_SIZE, EMBEDDING_SIZE, INPUT_SIZE, NUM_CLASSES
    bound = 1.0 / jnp.sqrt(jnp.float32(H))
    return {
        "emb":  jax.random.normal(ks[0], (V, E), jnp.float32),                 # (V, E)
        "w_ih": jax.random.uniform(ks[1], (3 * H, E), jnp.float32, -bound, bound),
        "w_hh": jax.random.uniform(ks[2], (3 * H, H), jnp.float32, -bound, bound),
        "b_ih": jax.random.uniform(ks[3], (3 * H,), jnp.float32, -bound, bound),
        "b_hh": jax.random.uniform(ks[4], (3 * H,), jnp.float32, -bound, bound),
        "w_fc": jax.random.uniform(ks[5], (C, H), jnp.float32, -bound, bound),
        "b_fc": jax.random.uniform(ks[6], (C,), jnp.float32, -bound, bound),
    }


def pack_params(tp):
    """Fold + fuse everything host-side into one lane-aligned (32, 128) f32 slab."""
    H, C, V = HIDDEN_SIZE, NUM_CLASSES, INPUT_SIZE
    G = 3 * H
    emb_ih = tp["emb"] @ tp["w_ih"].T                   # (V, 3H): embedding folded in
    whh_t = tp["w_hh"].T                                # (H, 3H)
    wfc_t = tp["w_fc"].T                                # (H, C)
    b_i = tp["b_ih"].at[: 2 * H].add(tp["b_hh"][: 2 * H])   # fold r/z hidden biases
    b_hn = tp["b_hh"][2 * H:]
    b_fc = tp["b_fc"]

    p = jnp.zeros((_PARAM_ROWS, _PACK_COLS), jnp.float32)
    p = p.at[_ROW_EMB:_ROW_EMB + V, 0:G].set(emb_ih)
    p = p.at[_ROW_WHH:_ROW_WHH + H, 0:G].set(whh_t)
    p = p.at[_ROW_WFC:_ROW_WFC + H, 0:C].set(wfc_t)
    p = p.at[_ROW_BI, 0:G].set(b_i)
    p = p.at[_ROW_BHN, 0:H].set(b_hn)
    p = p.at[_ROW_BFC, 0:C].set(b_fc)
    return p


def reference_forward(x, tp):
    """Pure-JAX reference (same math as the PyTorch module, un-fused)."""
    B, T = x.shape
    H = HIDDEN_SIZE
    e = tp["emb"][x]                                    # (B, T, E)
    w_ih, w_hh, b_ih, b_hh = tp["w_ih"], tp["w_hh"], tp["b_ih"], tp["b_hh"]

    def cell(h, e_t):
        gi = e_t @ w_ih.T + b_ih                        # (B, 3H)
        gh = h @ w_hh.T + b_hh                          # (B, 3H)
        r = jax.nn.sigmoid(gi[:, :H] + gh[:, :H])
        z = jax.nn.sigmoid(gi[:, H:2 * H] + gh[:, H:2 * H])
        n = jnp.tanh(gi[:, 2 * H:] + r * gh[:, 2 * H:])
        h_new = (1.0 - z) * n + z * h
        return h_new, h_new

    _, hs = lax.scan(cell, jnp.zeros((B, H), jnp.float32), jnp.swapaxes(e, 0, 1))
    hs = jnp.swapaxes(hs, 0, 1)                         # (B, T, H)
    y = hs @ tp["w_fc"].T + tp["b_fc"]                  # (B, T, C)
    return y.reshape(-1, NUM_CLASSES)


if __name__ == "__main__":
    key = jax.random.PRNGKey(0)
    k_params, k_x = jax.random.split(key)

    torch_params = init_torch_params(k_params)
    packed = pack_params(torch_params)

    B, T = 2, 8
    x = jax.random.randint(k_x, (B, T), 0, INPUT_SIZE, dtype=jnp.int32)

    out = jax.block_until_ready(model_forward(x, packed))
    ref = reference_forward(x, torch_params)

    assert out.shape == (B * T, NUM_CLASSES)
    max_err = jnp.max(jnp.abs(out - ref))
    assert jnp.allclose(out, ref, atol=1e-5, rtol=1e-5), f"mismatch: max abs err {max_err}"

    print("KERNEL_OK")
</pallas_src>

<mosaic_0001>
module attributes {stable_mosaic.version = 11 : i64} {
  func.func @gru_model_kernel(%arg0: memref<48x128xf32, #tpu.memory_space<vmem>>, %arg1: memref<16x4xf32, #tpu.memory_space<vmem>>) attributes {dimension_semantics = [], scalar_prefetch = 0 : i64, scratch_operands = 0 : i64, tpu.core_type = #tpu.core_type<tc>} {
    %c0 = arith.constant 0 : index
    %c0_0 = arith.constant 0 : index
    %0 = vector.load %arg0[%c0, %c0_0] : memref<48x128xf32, #tpu.memory_space<vmem>>, vector<4x12xf32>
    %c8 = arith.constant 8 : index
    %c0_1 = arith.constant 0 : index
    %1 = vector.load %arg0[%c8, %c0_1] : memref<48x128xf32, #tpu.memory_space<vmem>>, vector<4x12xf32>
    %c16 = arith.constant 16 : index
    %c0_2 = arith.constant 0 : index
    %2 = vector.load %arg0[%c16, %c0_2] : memref<48x128xf32, #tpu.memory_space<vmem>>, vector<4x4xf32>
    %c24 = arith.constant 24 : index
    %c0_3 = arith.constant 0 : index
    %3 = vector.load %arg0[%c24, %c0_3] : memref<48x128xf32, #tpu.memory_space<vmem>>, vector<1x12xf32>
    %c25 = arith.constant 25 : index
    %c0_4 = arith.constant 0 : index
    %4 = vector.load %arg0[%c25, %c0_4] : memref<48x128xf32, #tpu.memory_space<vmem>>, vector<1x4xf32>
    %c26 = arith.constant 26 : index
    %c0_5 = arith.constant 0 : index
    %5 = vector.load %arg0[%c26, %c0_5] : memref<48x128xf32, #tpu.memory_space<vmem>>, vector<1x4xf32>
    %c32 = arith.constant 32 : index
    %c0_6 = arith.constant 0 : index
    %6 = vector.load %arg0[%c32, %c0_6] : memref<48x128xf32, #tpu.memory_space<vmem>>, vector<16x1xf32>
    %7 = arith.fptosi %6 : vector<16x1xf32> to vector<16x1xi32>
    %8 = tpu.iota {dimensions = array<i32: 1>} : vector<16x4xi32>
    %9 = vector.broadcast %7 : vector<16x1xi32> to vector<16x4xi32>
    %10 = arith.cmpi eq, %9, %8 : vector<16x4xi32>
    %11 = arith.extui %10 : vector<16x4xi1> to vector<16x4xi32>
    %12 = arith.sitofp %11 : vector<16x4xi32> to vector<16x4xf32>
    %cst = arith.constant dense<0.000000e+00> : vector<16x12xf32>
    %13 = tpu.matmul %12, %0, %cst {dimension_numbers = #tpu.dot_dimension_numbers<[1], [0], [0], [1], [0, 0, 1, 1], [], []>} : vector<16x4xf32>, vector<4x12xf32>, vector<16x12xf32> -> vector<16x12xf32>
    %14 = vector.broadcast %3 : vector<1x12xf32> to vector<16x12xf32>
    %15 = arith.addf %13, %14 : vector<16x12xf32>
    %16 = vector.extract_strided_slice %1 {offsets = [0, 0], sizes = [1, 12], strides = [1, 1]} : vector<4x12xf32> to vector<1x12xf32>
    %17 = vector.shape_cast %16 : vector<1x12xf32> to vector<1x12xf32>
    %18 = vector.broadcast %17 : vector<1x12xf32> to vector<2x12xf32>
    %19 = vector.extract_strided_slice %1 {offsets = [1, 0], sizes = [1, 12], strides = [1, 1]} : vector<4x12xf32> to vector<1x12xf32>
    %20 = vector.shape_cast %19 : vector<1x12xf32> to vector<1x12xf32>
    %21 = vector.broadcast %20 : vector<1x12xf32> to vector<2x12xf32>
    %22 = vector.extract_strided_slice %1 {offsets = [2, 0], sizes = [1, 12], strides = [1, 1]} : vector<4x12xf32> to vector<1x12xf32>
    %23 = vector.shape_cast %22 : vector<1x12xf32> to vector<1x12xf32>
    %24 = vector.broadcast %23 : vector<1x12xf32> to vector<2x12xf32>
    %25 = vector.extract_strided_slice %1 {offsets = [3, 0], sizes = [1, 12], strides = [1, 1]} : vector<4x12xf32> to vector<1x12xf32>
    %26 = vector.shape_cast %25 : vector<1x12xf32> to vector<1x12xf32>
    %27 = vector.broadcast %26 : vector<1x12xf32> to vector<2x12xf32>
    %cst_7 = arith.constant 0.000000e+00 : f32
    %28 = vector.broadcast %cst_7 : f32 to vector<2x4xf32>
    %29 = vector.extract_strided_slice %15 {offsets = [0, 0], sizes = [2, 12], strides = [1, 1]} : vector<16x12xf32> to vector<2x12xf32>
    %30 = vector.extract_strided_slice %28 {offsets = [0, 0], sizes = [2, 1], strides = [1, 1]} : vector<2x4xf32> to vector<2x1xf32>
    %31 = vector.broadcast %30 : vector<2x1xf32> to vector<2x12xf32>
    %32 = arith.mulf %31, %18 : vector<2x12xf32>
    %33 = vector.extract_strided_slice %28 {offsets = [0, 1], sizes = [2, 1], strides = [1, 1]} : vector<2x4xf32> to vector<2x1xf32>
    %34 = vector.broadcast %33 : vector<2x1xf32> to vector<2x12xf32>
    %35 = arith.mulf %34, %21 : vector<2x12xf32>
    %36 = arith.addf %32, %35 : vector<2x12xf32>
    %37 = vector.extract_strided_slice %28 {offsets = [0, 2], sizes = [2, 1], strides = [1, 1]} : vector<2x4xf32> to vector<2x1xf32>
    %38 = vector.broadcast %37 : vector<2x1xf32> to vector<2x12xf32>
    %39 = arith.mulf %38, %24 : vector<2x12xf32>
    %40 = arith.addf %36, %39 : vector<2x12xf32>
    %41 = vector.extract_strided_slice %28 {offsets = [0, 3], sizes = [2, 1], strides = [1, 1]} : vector<2x4xf32> to vector<2x1xf32>
    %42 = vector.broadcast %41 : vector<2x1xf32> to vector<2x12xf32>
    %43 = arith.mulf %42, %27 : vector<2x12xf32>
    %44 = arith.addf %40, %43 : vector<2x12xf32>
    %45 = vector.extract_strided_slice %29 {offsets = [0, 0], sizes = [2, 8], strides = [1, 1]} : vector<2x12xf32> to vector<2x8xf32>
    %46 = vector.extract_strided_slice %44 {offsets = [0, 0], sizes = [2, 8], strides = [1, 1]} : vector<2x12xf32> to vector<2x8xf32>
    %47 = arith.addf %45, %46 : vector<2x8xf32>
    %48 = arith.negf %47 : vector<2x8xf32>
    %49 = math.exp %48 : vector<2x8xf32>
    %cst_8 = arith.constant 1.000000e+00 : f32
    %50 = vector.broadcast %cst_8 : f32 to vector<2x8xf32>
    %51 = arith.addf %50, %49 : vector<2x8xf32>
    %52 = arith.divf %50, %51 : vector<2x8xf32>
    %53 = vector.extract_strided_slice %52 {offsets = [0, 0], sizes = [2, 4], strides = [1, 1]} : vector<2x8xf32> to vector<2x4xf32>
    %54 = vector.extract_strided_slice %52 {offsets = [0, 4], sizes = [2, 4], strides = [1, 1]} : vector<2x8xf32> to vector<2x4xf32>
    %55 = vector.extract_strided_slice %29 {offsets = [0, 8], sizes = [2, 4], strides = [1, 1]} : vector<2x12xf32> to vector<2x4xf32>
    %56 = vector.extract_strided_slice %44 {offsets = [0, 8], sizes = [2, 4], strides = [1, 1]} : vector<2x12xf32> to vector<2x4xf32>
    %57 = vector.broadcast %4 : vector<1x4xf32> to vector<2x4xf32>
    %58 = arith.addf %56, %57 : vector<2x4xf32>
    %59 = arith.mulf %53, %58 : vector<2x4xf32>
    %60 = arith.addf %55, %59 : vector<2x4xf32>
    %61 = math.tanh %60 : vector<2x4xf32>
    %62 = arith.subf %28, %61 : vector<2x4xf32>
    %63 = arith.mulf %54, %62 : vector<2x4xf32>
    %64 = arith.addf %61, %63 : vector<2x4xf32>
    %65 = vector.extract_strided_slice %15 {offsets = [2, 0], sizes = [2, 12], strides = [1, 1]} : vector<16x12xf32> to vector<2x12xf32>
    %66 = vector.extract_strided_slice %64 {offsets = [0, 0], sizes = [2, 1], strides = [1, 1]} : vector<2x4xf32> to vector<2x1xf32>
    %67 = vector.broadcast %66 : vector<2x1xf32> to vector<2x12xf32>
    %68 = arith.mulf %67, %18 : vector<2x12xf32>
    %69 = vector.extract_strided_slice %64 {offsets = [0, 1], sizes = [2, 1], strides = [1, 1]} : vector<2x4xf32> to vector<2x1xf32>
    %70 = vector.broadcast %69 : vector<2x1xf32> to vector<2x12xf32>
    %71 = arith.mulf %70, %21 : vector<2x12xf32>
    %72 = arith.addf %68, %71 : vector<2x12xf32>
    %73 = vector.extract_strided_slice %64 {offsets = [0, 2], sizes = [2, 1], strides = [1, 1]} : vector<2x4xf32> to vector<2x1xf32>
    %74 = vector.broadcast %73 : vector<2x1xf32> to vector<2x12xf32>
    %75 = arith.mulf %74, %24 : vector<2x12xf32>
    %76 = arith.addf %72, %75 : vector<2x12xf32>
    %77 = vector.extract_strided_slice %64 {offsets = [0, 3], sizes = [2, 1], strides = [1, 1]} : vector<2x4xf32> to vector<2x1xf32>
    %78 = vector.broadcast %77 : vector<2x1xf32> to vector<2x12xf32>
    %79 = arith.mulf %78, %27 : vector<2x12xf32>
    %80 = arith.addf %76, %79 : vector<2x12xf32>
    %81 = vector.extract_strided_slice %65 {offsets = [0, 0], sizes = [2, 8], strides = [1, 1]} : vector<2x12xf32> to vector<2x8xf32>
    %82 = vector.extract_strided_slice %80 {offsets = [0, 0], sizes = [2, 8], strides = [1, 1]} : vector<2x12xf32> to vector<2x8xf32>
    %83 = arith.addf %81, %82 : vector<2x8xf32>
    %84 = arith.negf %83 : vector<2x8xf32>
    %85 = math.exp %84 : vector<2x8xf32>
    %cst_9 = arith.constant 1.000000e+00 : f32
    %86 = vector.broadcast %cst_9 : f32 to vector<2x8xf32>
    %87 = arith.addf %86, %85 : vector<2x8xf32>
    %88 = arith.divf %86, %87 : vector<2x8xf32>
    %89 = vector.extract_strided_slice %88 {offsets = [0, 0], sizes = [2, 4], strides = [1, 1]} : vector<2x8xf32> to vector<2x4xf32>
    %90 = vector.extract_strided_slice %88 {offsets = [0, 4], sizes = [2, 4], strides = [1, 1]} : vector<2x8xf32> to vector<2x4xf32>
    %91 = vector.extract_strided_slice %65 {offsets = [0, 8], sizes = [2, 4], strides = [1, 1]} : vector<2x12xf32> to vector<2x4xf32>
    %92 = vector.extract_strided_slice %80 {offsets = [0, 8], sizes = [2, 4], strides = [1, 1]} : vector<2x12xf32> to vector<2x4xf32>
    %93 = vector.broadcast %4 : vector<1x4xf32> to vector<2x4xf32>
    %94 = arith.addf %92, %93 : vector<2x4xf32>
    %95 = arith.mulf %89, %94 : vector<2x4xf32>
    %96 = arith.addf %91, %95 : vector<2x4xf32>
    %97 = math.tanh %96 : vector<2x4xf32>
    %98 = arith.subf %64, %97 : vector<2x4xf32>
    %99 = arith.mulf %90, %98 : vector<2x4xf32>
    %100 = arith.addf %97, %99 : vector<2x4xf32>
    %101 = vector.extract_strided_slice %15 {offsets = [4, 0], sizes = [2, 12], strides = [1, 1]} : vector<16x12xf32> to vector<2x12xf32>
    %102 = vector.extract_strided_slice %100 {offsets = [0, 0], sizes = [2, 1], strides = [1, 1]} : vector<2x4xf32> to vector<2x1xf32>
    %103 = vector.broadcast %102 : vector<2x1xf32> to vector<2x12xf32>
    %104 = arith.mulf %103, %18 : vector<2x12xf32>
    %105 = vector.extract_strided_slice %100 {offsets = [0, 1], sizes = [2, 1], strides = [1, 1]} : vector<2x4xf32> to vector<2x1xf32>
    %106 = vector.broadcast %105 : vector<2x1xf32> to vector<2x12xf32>
    %107 = arith.mulf %106, %21 : vector<2x12xf32>
    %108 = arith.addf %104, %107 : vector<2x12xf32>
    %109 = vector.extract_strided_slice %100 {offsets = [0, 2], sizes = [2, 1], strides = [1, 1]} : vector<2x4xf32> to vector<2x1xf32>
    %110 = vector.broadcast %109 : vector<2x1xf32> to vector<2x12xf32>
    %111 = arith.mulf %110, %24 : vector<2x12xf32>
    %112 = arith.addf %108, %111 : vector<2x12xf32>
    %113 = vector.extract_strided_slice %100 {offsets = [0, 3], sizes = [2, 1], strides = [1, 1]} : vector<2x4xf32> to vector<2x1xf32>
    %114 = vector.broadcast %113 : vector<2x1xf32> to vector<2x12xf32>
    %115 = arith.mulf %114, %27 : vector<2x12xf32>
    %116 = arith.addf %112, %115 : vector<2x12xf32>
    %117 = vector.extract_strided_slice %101 {offsets = [0, 0], sizes = [2, 8], strides = [1, 1]} : vector<2x12xf32> to vector<2x8xf32>
    %118 = vector.extract_strided_slice %116 {offsets = [0, 0], sizes = [2, 8], strides = [1, 1]} : vector<2x12xf32> to vector<2x8xf32>
    %119 = arith.addf %117, %118 : vector<2x8xf32>
    %120 = arith.negf %119 : vector<2x8xf32>
    %121 = math.exp %120 : vector<2x8xf32>
    %cst_10 = arith.constant 1.000000e+00 : f32
    %122 = vector.broadcast %cst_10 : f32 to vector<2x8xf32>
    %123 = arith.addf %122, %121 : vector<2x8xf32>
    %124 = arith.divf %122, %123 : vector<2x8xf32>
    %125 = vector.extract_strided_slice %124 {offsets = [0, 0], sizes = [2, 4], strides = [1, 1]} : vector<2x8xf32> to vector<2x4xf32>
    %126 = vector.extract_strided_slice %124 {offsets = [0, 4], sizes = [2, 4], strides = [1, 1]} : vector<2x8xf32> to vector<2x4xf32>
    %127 = vector.extract_strided_slice %101 {offsets = [0, 8], sizes = [2, 4], strides = [1, 1]} : vector<2x12xf32> to vector<2x4xf32>
    %128 = vector.extract_strided_slice %116 {offsets = [0, 8], sizes = [2, 4], strides = [1, 1]} : vector<2x12xf32> to vector<2x4xf32>
    %129 = vector.broadcast %4 : vector<1x4xf32> to vector<2x4xf32>
    %130 = arith.addf %128, %129 : vector<2x4xf32>
    %131 = arith.mulf %125, %130 : vector<2x4xf32>
    %132 = arith.addf %127, %131 : vector<2x4xf32>
    %133 = math.tanh %132 : vector<2x4xf32>
    %134 = arith.subf %100, %133 : vector<2x4xf32>
    %135 = arith.mulf %126, %134 : vector<2x4xf32>
    %136 = arith.addf %133, %135 : vector<2x4xf32>
    %137 = vector.extract_strided_slice %15 {offsets = [6, 0], sizes = [2, 12], strides = [1, 1]} : vector<16x12xf32> to vector<2x12xf32>
    %138 = vector.extract_strided_slice %136 {offsets = [0, 0], sizes = [2, 1], strides = [1, 1]} : vector<2x4xf32> to vector<2x1xf32>
    %139 = vector.broadcast %138 : vector<2x1xf32> to vector<2x12xf32>
    %140 = arith.mulf %139, %18 : vector<2x12xf32>
    %141 = vector.extract_strided_slice %136 {offsets = [0, 1], sizes = [2, 1], strides = [1, 1]} : vector<2x4xf32> to vector<2x1xf32>
    %142 = vector.broadcast %141 : vector<2x1xf32> to vector<2x12xf32>
    %143 = arith.mulf %142, %21 : vector<2x12xf32>
    %144 = arith.addf %140, %143 : vector<2x12xf32>
    %145 = vector.extract_strided_slice %136 {offsets = [0, 2], sizes = [2, 1], strides = [1, 1]} : vector<2x4xf32> to vector<2x1xf32>
    %146 = vector.broadcast %145 : vector<2x1xf32> to vector<2x12xf32>
    %147 = arith.mulf %146, %24 : vector<2x12xf32>
    %148 = arith.addf %144, %147 : vector<2x12xf32>
    %149 = vector.extract_strided_slice %136 {offsets = [0, 3], sizes = [2, 1], strides = [1, 1]} : vector<2x4xf32> to vector<2x1xf32>
    %150 = vector.broadcast %149 : vector<2x1xf32> to vector<2x12xf32>
    %151 = arith.mulf %150, %27 : vector<2x12xf32>
    %152 = arith.addf %148, %151 : vector<2x12xf32>
    %153 = vector.extract_strided_slice %137 {offsets = [0, 0], sizes = [2, 8], strides = [1, 1]} : vector<2x12xf32> to vector<2x8xf32>
    %154 = vector.extract_strided_slice %152 {offsets = [0, 0], sizes = [2, 8], strides = [1, 1]} : vector<2x12xf32> to vector<2x8xf32>
    %155 = arith.addf %153, %154 : vector<2x8xf32>
    %156 = arith.negf %155 : vector<2x8xf32>
    %157 = math.exp %156 : vector<2x8xf32>
    %cst_11 = arith.constant 1.000000e+00 : f32
    %158 = vector.broadcast %cst_11 : f32 to vector<2x8xf32>
    %159 = arith.addf %158, %157 : vector<2x8xf32>
    %160 = arith.divf %158, %159 : vector<2x8xf32>
    %161 = vector.extract_strided_slice %160 {offsets = [0, 0], sizes = [2, 4], strides = [1, 1]} : vector<2x8xf32> to vector<2x4xf32>
    %162 = vector.extract_strided_slice %160 {offsets = [0, 4], sizes = [2, 4], strides = [1, 1]} : vector<2x8xf32> to vector<2x4xf32>
    %163 = vector.extract_strided_slice %137 {offsets = [0, 8], sizes = [2, 4], strides = [1, 1]} : vector<2x12xf32> to vector<2x4xf32>
    %164 = vector.extract_strided_slice %152 {offsets = [0, 8], sizes = [2, 4], strides = [1, 1]} : vector<2x12xf32> to vector<2x4xf32>
    %165 = vector.broadcast %4 : vector<1x4xf32> to vector<2x4xf32>
    %166 = arith.addf %164, %165 : vector<2x4xf32>
    %167 = arith.mulf %161, %166 : vector<2x4xf32>
    %168 = arith.addf %163, %167 : vector<2x4xf32>
    %169 = math.tanh %168 : vector<2x4xf32>
    %170 = arith.subf %136, %169 : vector<2x4xf32>
    %171 = arith.mulf %162, %170 : vector<2x4xf32>
    %172 = arith.addf %169, %171 : vector<2x4xf32>
    %173 = vector.extract_strided_slice %15 {offsets = [8, 0], sizes = [2, 12], strides = [1, 1]} : vector<16x12xf32> to vector<2x12xf32>
    %174 = vector.extract_strided_slice %172 {offsets = [0, 0], sizes = [2, 1], strides = [1, 1]} : vector<2x4xf32> to vector<2x1xf32>
    %175 = vector.broadcast %174 : vector<2x1xf32> to vector<2x12xf32>
    %176 = arith.mulf %175, %18 : vector<2x12xf32>
    %177 = vector.extract_strided_slice %172 {offsets = [0, 1], sizes = [2, 1], strides = [1, 1]} : vector<2x4xf32> to vector<2x1xf32>
    %178 = vector.broadcast %177 : vector<2x1xf32> to vector<2x12xf32>
    %179 = arith.mulf %178, %21 : vector<2x12xf32>
    %180 = arith.addf %176, %179 : vector<2x12xf32>
    %181 = vector.extract_strided_slice %172 {offsets = [0, 2], sizes = [2, 1], strides = [1, 1]} : vector<2x4xf32> to vector<2x1xf32>
    %182 = vector.broadcast %181 : vector<2x1xf32> to vector<2x12xf32>
    %183 = arith.mulf %182, %24 : vector<2x12xf32>
    %184 = arith.addf %180, %183 : vector<2x12xf32>
    %185 = vector.extract_strided_slice %172 {offsets = [0, 3], sizes = [2, 1], strides = [1, 1]} : vector<2x4xf32> to vector<2x1xf32>
    %186 = vector.broadcast %185 : vector<2x1xf32> to vector<2x12xf32>
    %187 = arith.mulf %186, %27 : vector<2x12xf32>
    %188 = arith.addf %184, %187 : vector<2x12xf32>
    %189 = vector.extract_strided_slice %173 {offsets = [0, 0], sizes = [2, 8], strides = [1, 1]} : vector<2x12xf32> to vector<2x8xf32>
    %190 = vector.extract_strided_slice %188 {offsets = [0, 0], sizes = [2, 8], strides = [1, 1]} : vector<2x12xf32> to vector<2x8xf32>
    %191 = arith.addf %189, %190 : vector<2x8xf32>
    %192 = arith.negf %191 : vector<2x8xf32>
    %193 = math.exp %192 : vector<2x8xf32>
    %cst_12 = arith.constant 1.000000e+00 : f32
    %194 = vector.broadcast %cst_12 : f32 to vector<2x8xf32>
    %195 = arith.addf %194, %193 : vector<2x8xf32>
    %196 = arith.divf %194, %195 : vector<2x8xf32>
    %197 = vector.extract_strided_slice %196 {offsets = [0, 0], sizes = [2, 4], strides = [1, 1]} : vector<2x8xf32> to vector<2x4xf32>
    %198 = vector.extract_strided_slice %196 {offsets = [0, 4], sizes = [2, 4], strides = [1, 1]} : vector<2x8xf32> to vector<2x4xf32>
    %199 = vector.extract_strided_slice %173 {offsets = [0, 8], sizes = [2, 4], strides = [1, 1]} : vector<2x12xf32> to vector<2x4xf32>
    %200 = vector.extract_strided_slice %188 {offsets = [0, 8], sizes = [2, 4], strides = [1, 1]} : vector<2x12xf32> to vector<2x4xf32>
    %201 = vector.broadcast %4 : vector<1x4xf32> to vector<2x4xf32>
    %202 = arith.addf %200, %201 : vector<2x4xf32>
    %203 = arith.mulf %197, %202 : vector<2x4xf32>
    %204 = arith.addf %199, %203 : vector<2x4xf32>
    %205 = math.tanh %204 : vector<2x4xf32>
    %206 = arith.subf %172, %205 : vector<2x4xf32>
    %207 = arith.mulf %198, %206 : vector<2x4xf32>
    %208 = arith.addf %205, %207 : vector<2x4xf32>
    %209 = vector.extract_strided_slice %15 {offsets = [10, 0], sizes = [2, 12], strides = [1, 1]} : vector<16x12xf32> to vector<2x12xf32>
    %210 = vector.extract_strided_slice %208 {offsets = [0, 0], sizes = [2, 1], strides = [1, 1]} : vector<2x4xf32> to vector<2x1xf32>
    %211 = vector.broadcast %210 : vector<2x1xf32> to vector<2x12xf32>
    %212 = arith.mulf %211, %18 : vector<2x12xf32>
    %213 = vector.extract_strided_slice %208 {offsets = [0, 1], sizes = [2, 1], strides = [1, 1]} : vector<2x4xf32> to vector<2x1xf32>
    %214 = vector.broadcast %213 : vector<2x1xf32> to vector<2x12xf32>
    %215 = arith.mulf %214, %21 : vector<2x12xf32>
    %216 = arith.addf %212, %215 : vector<2x12xf32>
    %217 = vector.extract_strided_slice %208 {offsets = [0, 2], sizes = [2, 1], strides = [1, 1]} : vector<2x4xf32> to vector<2x1xf32>
    %218 = vector.broadcast %217 : vector<2x1xf32> to vector<2x12xf32>
    %219 = arith.mulf %218, %24 : vector<2x12xf32>
    %220 = arith.addf %216, %219 : vector<2x12xf32>
    %221 = vector.extract_strided_slice %208 {offsets = [0, 3], sizes = [2, 1], strides = [1, 1]} : vector<2x4xf32> to vector<2x1xf32>
    %222 = vector.broadcast %221 : vector<2x1xf32> to vector<2x12xf32>
    %223 = arith.mulf %222, %27 : vector<2x12xf32>
    %224 = arith.addf %220, %223 : vector<2x12xf32>
    %225 = vector.extract_strided_slice %209 {offsets = [0, 0], sizes = [2, 8], strides = [1, 1]} : vector<2x12xf32> to vector<2x8xf32>
    %226 = vector.extract_strided_slice %224 {offsets = [0, 0], sizes = [2, 8], strides = [1, 1]} : vector<2x12xf32> to vector<2x8xf32>
    %227 = arith.addf %225, %226 : vector<2x8xf32>
    %228 = arith.negf %227 : vector<2x8xf32>
    %229 = math.exp %228 : vector<2x8xf32>
    %cst_13 = arith.constant 1.000000e+00 : f32
    %230 = vector.broadcast %cst_13 : f32 to vector<2x8xf32>
    %231 = arith.addf %230, %229 : vector<2x8xf32>
    %232 = arith.divf %230, %231 : vector<2x8xf32>
    %233 = vector.extract_strided_slice %232 {offsets = [0, 0], sizes = [2, 4], strides = [1, 1]} : vector<2x8xf32> to vector<2x4xf32>
    %234 = vector.extract_strided_slice %232 {offsets = [0, 4], sizes = [2, 4], strides = [1, 1]} : vector<2x8xf32> to vector<2x4xf32>
    %235 = vector.extract_strided_slice %209 {offsets = [0, 8], sizes = [2, 4], strides = [1, 1]} : vector<2x12xf32> to vector<2x4xf32>
    %236 = vector.extract_strided_slice %224 {offsets = [0, 8], sizes = [2, 4], strides = [1, 1]} : vector<2x12xf32> to vector<2x4xf32>
    %237 = vector.broadcast %4 : vector<1x4xf32> to vector<2x4xf32>
    %238 = arith.addf %236, %237 : vector<2x4xf32>
    %239 = arith.mulf %233, %238 : vector<2x4xf32>
    %240 = arith.addf %235, %239 : vector<2x4xf32>
    %241 = math.tanh %240 : vector<2x4xf32>
    %242 = arith.subf %208, %241 : vector<2x4xf32>
    %243 = arith.mulf %234, %242 : vector<2x4xf32>
    %244 = arith.addf %241, %243 : vector<2x4xf32>
    %245 = vector.extract_strided_slice %15 {offsets = [12, 0], sizes = [2, 12], strides = [1, 1]} : vector<16x12xf32> to vector<2x12xf32>
    %246 = vector.extract_strided_slice %244 {offsets = [0, 0], sizes = [2, 1], strides = [1, 1]} : vector<2x4xf32> to vector<2x1xf32>
    %247 = vector.broadcast %246 : vector<2x1xf32> to vector<2x12xf32>
    %248 = arith.mulf %247, %18 : vector<2x12xf32>
    %249 = vector.extract_strided_slice %244 {offsets = [0, 1], sizes = [2, 1], strides = [1, 1]} : vector<2x4xf32> to vector<2x1xf32>
    %250 = vector.broadcast %249 : vector<2x1xf32> to vector<2x12xf32>
    %251 = arith.mulf %250, %21 : vector<2x12xf32>
    %252 = arith.addf %248, %251 : vector<2x12xf32>
    %253 = vector.extract_strided_slice %244 {offsets = [0, 2], sizes = [2, 1], strides = [1, 1]} : vector<2x4xf32> to vector<2x1xf32>
    %254 = vector.broadcast %253 : vector<2x1xf32> to vector<2x12xf32>
    %255 = arith.mulf %254, %24 : vector<2x12xf32>
    %256 = arith.addf %252, %255 : vector<2x12xf32>
    %257 = vector.extract_strided_slice %244 {offsets = [0, 3], sizes = [2, 1], strides = [1, 1]} : vector<2x4xf32> to vector<2x1xf32>
    %258 = vector.broadcast %257 : vector<2x1xf32> to vector<2x12xf32>
    %259 = arith.mulf %258, %27 : vector<2x12xf32>
    %260 = arith.addf %256, %259 : vector<2x12xf32>
    %261 = vector.extract_strided_slice %245 {offsets = [0, 0], sizes = [2, 8], strides = [1, 1]} : vector<2x12xf32> to vector<2x8xf32>
    %262 = vector.extract_strided_slice %260 {offsets = [0, 0], sizes = [2, 8], strides = [1, 1]} : vector<2x12xf32> to vector<2x8xf32>
    %263 = arith.addf %261, %262 : vector<2x8xf32>
    %264 = arith.negf %263 : vector<2x8xf32>
    %265 = math.exp %264 : vector<2x8xf32>
    %cst_14 = arith.constant 1.000000e+00 : f32
    %266 = vector.broadcast %cst_14 : f32 to vector<2x8xf32>
    %267 = arith.addf %266, %265 : vector<2x8xf32>
    %268 = arith.divf %266, %267 : vector<2x8xf32>
    %269 = vector.extract_strided_slice %268 {offsets = [0, 0], sizes = [2, 4], strides = [1, 1]} : vector<2x8xf32> to vector<2x4xf32>
    %270 = vector.extract_strided_slice %268 {offsets = [0, 4], sizes = [2, 4], strides = [1, 1]} : vector<2x8xf32> to vector<2x4xf32>
    %271 = vector.extract_strided_slice %245 {offsets = [0, 8], sizes = [2, 4], strides = [1, 1]} : vector<2x12xf32> to vector<2x4xf32>
    %272 = vector.extract_strided_slice %260 {offsets = [0, 8], sizes = [2, 4], strides = [1, 1]} : vector<2x12xf32> to vector<2x4xf32>
    %273 = vector.broadcast %4 : vector<1x4xf32> to vector<2x4xf32>
    %274 = arith.addf %272, %273 : vector<2x4xf32>
    %275 = arith.mulf %269, %274 : vector<2x4xf32>
    %276 = arith.addf %271, %275 : vector<2x4xf32>
    %277 = math.tanh %276 : vector<2x4xf32>
    %278 = arith.subf %244, %277 : vector<2x4xf32>
    %279 = arith.mulf %270, %278 : vector<2x4xf32>
    %280 = arith.addf %277, %279 : vector<2x4xf32>
    %281 = vector.extract_strided_slice %15 {offsets = [14, 0], sizes = [2, 12], strides = [1, 1]} : vector<16x12xf32> to vector<2x12xf32>
    %282 = vector.extract_strided_slice %280 {offsets = [0, 0], sizes = [2, 1], strides = [1, 1]} : vector<2x4xf32> to vector<2x1xf32>
    %283 = vector.broadcast %282 : vector<2x1xf32> to vector<2x12xf32>
    %284 = arith.mulf %283, %18 : vector<2x12xf32>
    %285 = vector.extract_strided_slice %280 {offsets = [0, 1], sizes = [2, 1], strides = [1, 1]} : vector<2x4xf32> to vector<2x1xf32>
    %286 = vector.broadcast %285 : vector<2x1xf32> to vector<2x12xf32>
    %287 = arith.mulf %286, %21 : vector<2x12xf32>
    %288 = arith.addf %284, %287 : vector<2x12xf32>
    %289 = vector.extract_strided_slice %280 {offsets = [0, 2], sizes = [2, 1], strides = [1, 1]} : vector<2x4xf32> to vector<2x1xf32>
    %290 = vector.broadcast %289 : vector<2x1xf32> to vector<2x12xf32>
    %291 = arith.mulf %290, %24 : vector<2x12xf32>
    %292 = arith.addf %288, %291 : vector<2x12xf32>
    %293 = vector.extract_strided_slice %280 {offsets = [0, 3], sizes = [2, 1], strides = [1, 1]} : vector<2x4xf32> to vector<2x1xf32>
    %294 = vector.broadcast %293 : vector<2x1xf32> to vector<2x12xf32>
    %295 = arith.mulf %294, %27 : vector<2x12xf32>
    %296 = arith.addf %292, %295 : vector<2x12xf32>
    %297 = vector.extract_strided_slice %281 {offsets = [0, 0], sizes = [2, 8], strides = [1, 1]} : vector<2x12xf32> to vector<2x8xf32>
    %298 = vector.extract_strided_slice %296 {offsets = [0, 0], sizes = [2, 8], strides = [1, 1]} : vector<2x12xf32> to vector<2x8xf32>
    %299 = arith.addf %297, %298 : vector<2x8xf32>
    %300 = arith.negf %299 : vector<2x8xf32>
    %301 = math.exp %300 : vector<2x8xf32>
    %cst_15 = arith.constant 1.000000e+00 : f32
    %302 = vector.broadcast %cst_15 : f32 to vector<2x8xf32>
    %303 = arith.addf %302, %301 : vector<2x8xf32>
    %304 = arith.divf %302, %303 : vector<2x8xf32>
    %305 = vector.extract_strided_slice %304 {offsets = [0, 0], sizes = [2, 4], strides = [1, 1]} : vector<2x8xf32> to vector<2x4xf32>
    %306 = vector.extract_strided_slice %304 {offsets = [0, 4], sizes = [2, 4], strides = [1, 1]} : vector<2x8xf32> to vector<2x4xf32>
    %307 = vector.extract_strided_slice %281 {offsets = [0, 8], sizes = [2, 4], strides = [1, 1]} : vector<2x12xf32> to vector<2x4xf32>
    %308 = vector.extract_strided_slice %296 {offsets = [0, 8], sizes = [2, 4], strides = [1, 1]} : vector<2x12xf32> to vector<2x4xf32>
    %309 = vector.broadcast %4 : vector<1x4xf32> to vector<2x4xf32>
    %310 = arith.addf %308, %309 : vector<2x4xf32>
    %311 = arith.mulf %305, %310 : vector<2x4xf32>
    %312 = arith.addf %307, %311 : vector<2x4xf32>
    %313 = math.tanh %312 : vector<2x4xf32>
    %314 = arith.subf %280, %313 : vector<2x4xf32>
    %315 = arith.mulf %306, %314 : vector<2x4xf32>
    %316 = arith.addf %313, %315 : vector<2x4xf32>
    %317 = vector.extract_strided_slice %64 {offsets = [0, 0], sizes = [1, 4], strides = [1, 1]} : vector<2x4xf32> to vector<1x4xf32>
    %318 = vector.extract_strided_slice %100 {offsets = [0, 0], sizes = [1, 4], strides = [1, 1]} : vector<2x4xf32> to vector<1x4xf32>
    %319 = vector.extract_strided_slice %136 {offsets = [0, 0], sizes = [1, 4], strides = [1, 1]} : vector<2x4xf32> to vector<1x4xf32>
    %320 = vector.extract_strided_slice %172 {offsets = [0, 0], sizes = [1, 4], strides = [1, 1]} : vector<2x4xf32> to vector<1x4xf32>
    %321 = vector.extract_strided_slice %208 {offsets = [0, 0], sizes = [1, 4], strides = [1, 1]} : vector<2x4xf32> to vector<1x4xf32>
    %322 = vector.extract_strided_slice %244 {offsets = [0, 0], sizes = [1, 4], strides = [1, 1]} : vector<2x4xf32> to vector<1x4xf32>
    %323 = vector.extract_strided_slice %280 {offsets = [0, 0], sizes = [1, 4], strides = [1, 1]} : vector<2x4xf32> to vector<1x4xf32>
    %324 = vector.extract_strided_slice %316 {offsets = [0, 0], sizes = [1, 4], strides = [1, 1]} : vector<2x4xf32> to vector<1x4xf32>
    %325 = vector.extract_strided_slice %64 {offsets = [1, 0], sizes = [1, 4], strides = [1, 1]} : vector<2x4xf32> to vector<1x4xf32>
    %326 = vector.extract_strided_slice %100 {offsets = [1, 0], sizes = [1, 4], strides = [1, 1]} : vector<2x4xf32> to vector<1x4xf32>
    %327 = vector.extract_strided_slice %136 {offsets = [1, 0], sizes = [1, 4], strides = [1, 1]} : vector<2x4xf32> to vector<1x4xf32>
    %328 = vector.extract_strided_slice %172 {offsets = [1, 0], sizes = [1, 4], strides = [1, 1]} : vector<2x4xf32> to vector<1x4xf32>
    %329 = vector.extract_strided_slice %208 {offsets = [1, 0], sizes = [1, 4], strides = [1, 1]} : vector<2x4xf32> to vector<1x4xf32>
    %330 = vector.extract_strided_slice %244 {offsets = [1, 0], sizes = [1, 4], strides = [1, 1]} : vector<2x4xf32> to vector<1x4xf32>
    %331 = vector.extract_strided_slice %280 {offsets = [1, 0], sizes = [1, 4], strides = [1, 1]} : vector<2x4xf32> to vector<1x4xf32>
    %332 = vector.extract_strided_slice %316 {offsets = [1, 0], sizes = [1, 4], strides = [1, 1]} : vector<2x4xf32> to vector<1x4xf32>
    %333 = tpu.concatenate %317, %318, %319, %320, %321, %322, %323, %324, %325, %326, %327, %328, %329, %330, %331, %332 in 0 : vector<1x4xf32>, vector<1x4xf32>, vector<1x4xf32>, vector<1x4xf32>, vector<1x4xf32>, vector<1x4xf32>, vector<1x4xf32>, vector<1x4xf32>, vector<1x4xf32>, vector<1x4xf32>, vector<1x4xf32>, vector<1x4xf32>, vector<1x4xf32>, vector<1x4xf32>, vector<1x4xf32>, vector<1x4xf32> -> vector<16x4xf32>
    %cst_16 = arith.constant dense<0.000000e+00> : vector<16x4xf32>
    %334 = tpu.matmul %333, %2, %cst_16 {dimension_numbers = #tpu.dot_dimension_numbers<[1], [0], [0], [1], [0, 0, 1, 1], [], []>} : vector<16x4xf32>, vector<4x4xf32>, vector<16x4xf32> -> vector<16x4xf32>
    %335 = vector.broadcast %5 : vector<1x4xf32> to vector<16x4xf32>
    %336 = arith.addf %334, %335 : vector<16x4xf32>
    %c0_17 = arith.constant 0 : index
    %c0_18 = arith.constant 0 : index
    %337 = vector.load %arg1[%c0_17, %c0_18] : memref<16x4xf32, #tpu.memory_space<vmem>>, vector<16x4xf32>
    tpu.vector_store %arg1[%c0_17, %c0_18], %336 {strides = array<i32>} : memref<16x4xf32, #tpu.memory_space<vmem>>, vector<16x4xf32>,
    return
  }
}

</mosaic_0001>

<llo_original>
// kernel: tpu_custom_call.1
$region0: #{tpu_custom_call.1}
  #allocation0 [shape = 'u32[]', space=smem, size = 0x4, offset = 0x4, fixed_abs, tag = 'smem constant byte address 0x4 - core index']
  #allocation1 [shape = 'u32[144,128]{1,0:T(1,128)}', space=vmem, size = 0x12000, scoped, tag = 'internal scratch']
  %s0 = inlined_call_operand.hbm [shape: f32[48,128], index: 0, kind: input, shape index: {}]
  %s1 = inlined_call_operand.vmem [shape: f32[16,4], index: 1, kind: output, shape index: {}]
  %s2 = sld [smem:[#allocation0]]
  $region18: #{tpu_custom_call.1} parent=0
    _
  %s4 = ssub.s32 1, %s2
  %s5 = scalar_select 0, %s4, %s2
  $region1: #{tpu_custom_call.1} parent=0
    #allocation2 [shape = 'u8[24576]{0}', space=vmem, size = 0x6000, scoped, tag = 'input window, operand 0, single buffered']
    #allocation3 [shape = 's32[1]{0}', space=sflag, size = 0x4, scoped, tag = 'scoped memory for tpu_custom_call.1']
    %6 = vsyncpa [#allocation3], 0
    // Predicated region
    $region2: #{tpu_custom_call.1} parent=1 // pred_check
      _
    $region3: #{tpu_custom_call.1} parent=1 // pred_check_branch
      %8 = sbr.rel (0) target = $region5
    $region4: #{tpu_custom_call.1} parent=1 // pred_region
      %s10 = ssub.s32 768, 768
      %11 = vsyncadd [#allocation3], %s10
      %s12 = sshll.u32 [#allocation2], 4
      %s13 = int_to_ptr.vmem [resolvable:$true] %s12
      %18 = dma.hbm_to_vmem [thread:$0]  %s0, 768, %s13, [#allocation3], 128, 128, 8
    $region5: #{tpu_custom_call.1} parent=1 // pred_fallthru
      _
    // Predicated region
    $region6: #{tpu_custom_call.1} parent=1 // pred_check
      _
    $region7: #{tpu_custom_call.1} parent=1 // pred_check_branch
      %20 = sbr.rel (0) target = $region9
    $region8: #{tpu_custom_call.1} parent=1 // pred_region
      %21 = dma.done [#allocation3], 768
    $region9: #{tpu_custom_call.1} parent=1 // pred_fallthru
      _
    %v22 = vld [vmem:[#allocation2] sm:$0xf]
    %v23 = vld [vmem:[#allocation2 + $0x8] sm:$0xf]
    %v24 = vld [vmem:[#allocation2 + $0x10] sm:$0xf]
    %v25 = vld [vmem:[#allocation2 + $0x18] sm:$0x1]
    %v26 = vld [vmem:[#allocation2 + $0x19] sm:$0x1]
    %v27 = vld [vmem:[#allocation2 + $0x1a] sm:$0x1]
    %v28 = vld [vmem:[#allocation2 + $0x20] sm:$0xff]
    %v29 = vld [vmem:[#allocation2 + $0x28] sm:$0xff]
    %v30 = vcvt.f32.s32.to.zero.pseudo %v28
    %v31 = vcvt.f32.s32.to.zero.pseudo %v29
    %v32 = vlaneseq
    %v33 = vand.u32 %v32, 127
    %34 = vset.pattern.permute.xlu0 0
    %35 = vperm.xlu0 %34, %v30
    %v36 = vpop.permute.xlu0 %35
    %37 = vset.pattern.permute.xlu0 0
    %38 = vperm.xlu0 %37, %v31
    %v39 = vpop.permute.xlu0 %38
    %vm40 = vcmp.eq.s32.totalorder %v36, %v33
    %vm41 = vcmp.eq.s32.totalorder %v39, %v33
    %v42 = vsel %vm40, 1, 0
    %v43 = vsel %vm41, 1, 0
    %v44 = vcvt.s32.f32 %v42
    %v45 = vcvt.s32.f32 %v43
    %v46 = vlaneseq
    %v47 = vshrl.u32 %v46, 7
    %v48 = vsub.s32 0, %v47
    %v49 = vrot.slane %v25, %v48
    %vm50 = vcmask 31744
    %v52 = vsel %vm50, %v44, 0
    %v55 = vsel %vm50, %v45, 0
    %vm57 = vcmask 1043456
    %v59 = vsel %vm57, %v22, 0
    %61 = vmatprep.subr.mxu0 0.0
    %62 = vmatpush1.msra.mxu0 %v59
    %63 = vmatprep.subr.mxu0 0.0
    %64 = vmatpush1.msra.mxu0 0.0
    %65 = vmatprep.subr.mxu0 0.0
    %66 = vmatpush1.msra.mxu0 0.0
    %67 = vmatprep.subr.mxu0 0.0
    %68 = vmatpush1.msra.mxu0 0.0
    %69 = vmatprep.subr.mxu0 0.0
    %70 = vmatpush1.msra.mxu0 0.0
    %71 = vmatprep.subr.mxu0 0.0
    %72 = vmatpush1.msra.mxu0 0.0
    %73 = vmatprep.subr.mxu0 0.0
    %74 = vmatpush1.msra.mxu0 0.0
    %75 = vmatprep.subr.mxu0 0.0
    %76 = vmatpush1.msra.mxu0 0.0
    %77 = vmatprep.subr.mxu0 0.0
    %78 = vmatpush1.msra.mxu0 0.0
    %79 = vmatprep.subr.mxu0 0.0
    %80 = vmatpush1.msra.mxu0 0.0
    %81 = vmatprep.subr.mxu0 0.0
    %82 = vmatpush1.msra.mxu0 0.0
    %83 = vmatprep.subr.mxu0 0.0
    %84 = vmatpush1.msra.mxu0 0.0
    %85 = vmatprep.subr.mxu0 0.0
    %86 = vmatpush1.msra.mxu0 0.0
    %87 = vmatprep.subr.mxu0 0.0
    %88 = vmatpush1.msra.mxu0 0.0
    %89 = vmatprep.subr.mxu0 0.0
    %90 = vmatpush1.msra.mxu0 0.0
    %91 = vmatprep.subr.mxu0 0.0
    %92 = vmatpush1.msra.mxu0 0.0
    %93 = vmatprep.subr.mxu0 0.0
    %94 = vmatpush1.msra.mxu0 0.0
    %95 = vmatprep.subr.mxu0 0.0
    %96 = vmatpush1.msra.mxu0 0.0
    %97 = vmatprep.subr.mxu0 0.0
    %98 = vmatpush1.msra.mxu0 0.0
    %99 = vmatprep.subr.mxu0 0.0
    %100 = vmatpush1.msra.mxu0 0.0
    %101 = vmatprep.subr.mxu0 0.0
    %102 = vmatpush1.msra.mxu0 0.0
    %103 = vmatprep.subr.mxu0 0.0
    %104 = vmatpush1.msra.mxu0 0.0
    %105 = vmatprep.subr.mxu0 0.0
    %106 = vmatpush1.msra.mxu0 0.0
    %107 = vmatprep.subr.mxu0 0.0
    %108 = vmatpush1.msra.mxu0 0.0
    %109 = vmatprep.subr.mxu0 0.0
    %110 = vmatpush1.msra.mxu0 0.0
    %111 = vmatprep.subr.mxu0 0.0
    %112 = vmatpush1.msra.mxu0 0.0
    %113 = vmatprep.subr.mxu0 0.0
    %114 = vmatpush1.msra.mxu0 0.0
    %115 = vmatprep.subr.mxu0 0.0
    %116 = vmatpush1.msra.mxu0 0.0
    %117 = vmatprep.subr.mxu0 0.0
    %118 = vmatpush1.msra.mxu0 0.0
    %119 = vmatprep.subr.mxu0 0.0
    %120 = vmatpush1.msra.mxu0 0.0
    %121 = vmatprep.subr.mxu0 0.0
    %122 = vmatpush1.msra.mxu0 0.0
    %123 = vmatprep.subr.mxu0 0.0
    %124 = vmatpush1.msra.mxu0 0.0
    %125 = vmatprep.mubr.f32.mxu0 0.0
    %126 = vmatmul.mubr.f32.gmra.mrb[0].mxu0 %v52
    %v127 = vpop.f32.mrb[0].mxu0
    %v128 = vadd.f32 %v49, %v127
    %v129 = vpop.f32.mrb[0].mxu0
    %130 = vmatprep.mubr.f32.mxu0 0.0
    %131 = vmatmul.mubr.f32.gmra.mrb[0].mxu0 %v55
    %v132 = vpop.f32.mrb[0].mxu0
    %v133 = vadd.f32 %v49, %v132
    %v134 = vpop.f32.mrb[0].mxu0
    %135 = vdwg.mxu0
    %v136 = vlaneseq
    %v137 = vshrl.u32 %v136, 7
    %v138 = vsub.s32 0, %v137
    %v139 = vrot.slane %v23, %v138
    %v140 = vlaneseq
    %v141 = vshrl.u32 %v140, 7
    %v142 = vsub.s32 1, %v141
    %v143 = vrot.slane %v23, %v142
    %v144 = vlaneseq
    %v145 = vshrl.u32 %v144, 7
    %v146 = vsub.s32 2, %v145
    %v147 = vrot.slane %v23, %v146
    %v148 = vlaneseq
    %v149 = vshrl.u32 %v148, 7
    %v150 = vsub.s32 3, %v149
    %v151 = vrot.slane %v23, %v150
    %v152 = vmul.f32 %v139, 0.0
    %v153 = vmul.f32 %v143, 0.0
    %v154 = vadd.f32 %v152, %v153
    %v155 = vmul.f32 %v147, 0.0
    %v156 = vadd.f32 %v154, %v155
    %v157 = vmul.f32 %v151, 0.0
    %v158 = vadd.f32 %v156, %v157
    %v159 = vadd.f32 %v128, %v158
    %v160 = vxor.u32 %v159, 2147483648
    %v161 = vmul.f32 %v160, 1.442695
    %v162 = vpow.pop %v161
    %v163 = vadd.f32 %v162, 1.0
    %v164 = vrcp.pop %v163
    %v165 = vmul.f32 1.0, %v164
    %v166 = vlaneseq
    %v167 = vshrl.u32 %v166, 7
    %v168 = vsub.s32 0, %v167
    %v169 = vrot.slane %v26, %v168
    %171 = vrot.lane.b32.xlu0 %v169, 8
    %v172 = vpop.permute.xlu0 %171
    %v174 = vadd.f32 %v158, %v172
    %176 = vrot.lane.b32.xlu0 %v174, 120
    %v177 = vpop.permute.xlu0 %176
    %v179 = vmul.f32 %v165, %v177
    %181 = vrot.lane.b32.xlu0 %v179, 8
    %v182 = vpop.permute.xlu0 %181
    %v184 = vadd.f32 %v128, %v182
    %v185 = vtanh.pop %v184
    %v186 = vsub.f32 0.0, %v185
    %188 = vrot.lane.b32.xlu0 %v186, 124
    %v189 = vpop.permute.xlu0 %188
    %v191 = vmul.f32 %v165, %v189
    %193 = vrot.lane.b32.xlu0 %v191, 4
    %v194 = vpop.permute.xlu0 %193
    %v196 = vadd.f32 %v185, %v194
    %198 = vset.pattern.permute.xlu0 8
    %199 = vperm.xlu0 %198, %v196
    %v200 = vpop.permute.xlu0 %199
    %v202 = vmul.f32 %v200, %v139
    %203 = vset.pattern.permute.xlu0 9
    %204 = vperm.xlu0 %203, %v196
    %v205 = vpop.permute.xlu0 %204
    %v207 = vmul.f32 %v205, %v143
    %v208 = vadd.f32 %v202, %v207
    %209 = vset.pattern.permute.xlu0 10
    %210 = vperm.xlu0 %209, %v196
    %v211 = vpop.permute.xlu0 %210
    %v213 = vmul.f32 %v211, %v147
    %v214 = vadd.f32 %v208, %v213
    %215 = vset.pattern.permute.xlu0 11
    %216 = vperm.xlu0 %215, %v196
    %v217 = vpop.permute.xlu0 %216
    %v219 = vmul.f32 %v217, %v151
    %v220 = vadd.f32 %v214, %v219
    %v222 = vrot.slane %v220, 6
    %v224 = vadd.f32 %v128, %v222
    %v225 = vxor.u32 %v224, 2147483648
    %v226 = vmul.f32 %v225, 1.442695
    %v227 = vpow.pop %v226
    %v228 = vadd.f32 %v227, 1.0
    %v229 = vrcp.pop %v228
    %v230 = vmul.f32 1.0, %v229
    %v231 = vadd.f32 %v220, %v172
    %v233 = vrot.slane %v231, 6
    %234 = vrot.lane.b32.xlu0 %v233, 120
    %v235 = vpop.permute.xlu0 %234
    %v237 = vmul.f32 %v230, %v235
    %239 = vrot.lane.b32.xlu0 %v237, 8
    %v240 = vpop.permute.xlu0 %239
    %v242 = vadd.f32 %v128, %v240
    %v243 = vtanh.pop %v242
    %v245 = vrot.slane %v243, 2
    %v247 = vsub.f32 %v196, %v245
    %v249 = vrot.slane %v247, 6
    %250 = vrot.lane.b32.xlu0 %v249, 124
    %v251 = vpop.permute.xlu0 %250
    %v253 = vmul.f32 %v230, %v251
    %255 = vrot.lane.b32.xlu0 %v253, 4
    %v256 = vpop.permute.xlu0 %255
    %v258 = vadd.f32 %v243, %v256
    %260 = vset.pattern.permute.xlu0 8
    %261 = vperm.xlu0 %260, %v258
    %v262 = vpop.permute.xlu0 %261
    %v264 = vmul.f32 %v262, %v139
    %265 = vset.pattern.permute.xlu0 9
    %266 = vperm.xlu0 %265, %v258
    %v267 = vpop.permute.xlu0 %266
    %v269 = vmul.f32 %v267, %v143
    %v270 = vadd.f32 %v264, %v269
    %271 = vset.pattern.permute.xlu0 10
    %272 = vperm.xlu0 %271, %v258
    %v273 = vpop.permute.xlu0 %272
    %v275 = vmul.f32 %v273, %v147
    %v276 = vadd.f32 %v270, %v275
    %277 = vset.pattern.permute.xlu0 11
    %278 = vperm.xlu0 %277, %v258
    %v279 = vpop.permute.xlu0 %278
    %v281 = vmul.f32 %v279, %v151
    %v282 = vadd.f32 %v276, %v281
    %v284 = vrot.slane %v282, 6
    %v286 = vadd.f32 %v128, %v284
    %v287 = vxor.u32 %v286, 2147483648
    %v288 = vmul.f32 %v287, 1.442695
    %v289 = vpow.pop %v288
    %v290 = vadd.f32 %v289, 1.0
    %v291 = vrcp.pop %v290
    %v292 = vmul.f32 1.0, %v291
    %v293 = vadd.f32 %v282, %v172
    %v295 = vrot.slane %v293, 6
    %296 = vrot.lane.b32.xlu0 %v295, 120
    %v297 = vpop.permute.xlu0 %296
    %v299 = vmul.f32 %v292, %v297
    %301 = vrot.lane.b32.xlu0 %v299, 8
    %v302 = vpop.permute.xlu0 %301
    %v304 = vadd.f32 %v128, %v302
    %v305 = vtanh.pop %v304
    %v307 = vrot.slane %v305, 2
    %v309 = vsub.f32 %v258, %v307
    %v311 = vrot.slane %v309, 6
    %312 = vrot.lane.b32.xlu0 %v311, 124
    %v313 = vpop.permute.xlu0 %312
    %v315 = vmul.f32 %v292, %v313
    %317 = vrot.lane.b32.xlu0 %v315, 4
    %v318 = vpop.permute.xlu0 %317
    %v320 = vadd.f32 %v305, %v318
    %322 = vset.pattern.permute.xlu0 8
    %323 = vperm.xlu0 %322, %v320
    %v324 = vpop.permute.xlu0 %323
    %v326 = vmul.f32 %v324, %v139
    %327 = vset.pattern.permute.xlu0 9
    %328 = vperm.xlu0 %327, %v320
    %v329 = vpop.permute.xlu0 %328
    %v331 = vmul.f32 %v329, %v143
    %v332 = vadd.f32 %v326, %v331
    %333 = vset.pattern.permute.xlu0 10
    %334 = vperm.xlu0 %333, %v320
    %v335 = vpop.permute.xlu0 %334
    %v337 = vmul.f32 %v335, %v147
    %v338 = vadd.f32 %v332, %v337
    %339 = vset.pattern.permute.xlu0 11
    %340 = vperm.xlu0 %339, %v320
    %v341 = vpop.permute.xlu0 %340
    %v343 = vmul.f32 %v341, %v151
    %v344 = vadd.f32 %v338, %v343
    %v346 = vrot.slane %v344, 6
    %v348 = vadd.f32 %v128, %v346
    %v349 = vxor.u32 %v348, 2147483648
    %v350 = vmul.f32 %v349, 1.442695
    %v351 = vpow.pop %v350
    %v352 = vadd.f32 %v351, 1.0
    %v353 = vrcp.pop %v352
    %v354 = vmul.f32 1.0, %v353
    %v355 = vadd.f32 %v344, %v172
    %v357 = vrot.slane %v355, 6
    %358 = vrot.lane.b32.xlu0 %v357, 120
    %v359 = vpop.permute.xlu0 %358
    %v361 = vmul.f32 %v354, %v359
    %363 = vrot.lane.b32.xlu0 %v361, 8
    %v364 = vpop.permute.xlu0 %363
    %v366 = vadd.f32 %v128, %v364
    %v367 = vtanh.pop %v366
    %v369 = vrot.slane %v367, 2
    %v371 = vsub.f32 %v320, %v369
    %v373 = vrot.slane %v371, 6
    %374 = vrot.lane.b32.xlu0 %v373, 124
    %v375 = vpop.permute.xlu0 %374
    %v377 = vmul.f32 %v354, %v375
    %379 = vrot.lane.b32.xlu0 %v377, 4
    %v380 = vpop.permute.xlu0 %379
    %v382 = vadd.f32 %v367, %v380
    %384 = vset.pattern.permute.xlu0 8
    %385 = vperm.xlu0 %384, %v382
    %v386 = vpop.permute.xlu0 %385
    %v388 = vmul.f32 %v386, %v139
    %389 = vset.pattern.permute.xlu0 9
    %390 = vperm.xlu0 %389, %v382
    %v391 = vpop.permute.xlu0 %390
    %v393 = vmul.f32 %v391, %v143
    %v394 = vadd.f32 %v388, %v393
    %395 = vset.pattern.permute.xlu0 10
    %396 = vperm.xlu0 %395, %v382
    %v397 = vpop.permute.xlu0 %396
    %v399 = vmul.f32 %v397, %v147
    %v400 = vadd.f32 %v394, %v399
    %401 = vset.pattern.permute.xlu0 11
    %402 = vperm.xlu0 %401, %v382
    %v403 = vpop.permute.xlu0 %402
    %v405 = vmul.f32 %v403, %v151
    %v406 = vadd.f32 %v400, %v405
    %v408 = vrot.slane %v406, 6
    %v410 = vadd.f32 %v133, %v408
    %v411 = vxor.u32 %v410, 2147483648
    %v412 = vmul.f32 %v411, 1.442695
    %v413 = vpow.pop %v412
    %v414 = vadd.f32 %v413, 1.0
    %v415 = vrcp.pop %v414
    %v416 = vmul.f32 1.0, %v415
    %v417 = vadd.f32 %v406, %v172
    %v419 = vrot.slane %v417, 6
    %420 = vrot.lane.b32.xlu0 %v419, 120
    %v421 = vpop.permute.xlu0 %420
    %v423 = vmul.f32 %v416, %v421
    %425 = vrot.lane.b32.xlu0 %v423, 8
    %v426 = vpop.permute.xlu0 %425
    %v428 = vadd.f32 %v133, %v426
    %v429 = vtanh.pop %v428
    %v431 = vrot.slane %v429, 2
    %v433 = vsub.f32 %v382, %v431
    %v435 = vrot.slane %v433, 6
    %436 = vrot.lane.b32.xlu0 %v435, 124
    %v437 = vpop.permute.xlu0 %436
    %v439 = vmul.f32 %v416, %v437
    %441 = vrot.lane.b32.xlu0 %v439, 4
    %v442 = vpop.permute.xlu0 %441
    %v444 = vadd.f32 %v429, %v442
    %446 = vset.pattern.permute.xlu0 8
    %447 = vperm.xlu0 %446, %v444
    %v448 = vpop.permute.xlu0 %447
    %v450 = vmul.f32 %v448, %v139
    %451 = vset.pattern.permute.xlu0 9
    %452 = vperm.xlu0 %451, %v444
    %v453 = vpop.permute.xlu0 %452
    %v455 = vmul.f32 %v453, %v143
    %v456 = vadd.f32 %v450, %v455
    %457 = vset.pattern.permute.xlu0 10
    %458 = vperm.xlu0 %457, %v444
    %v459 = vpop.permute.xlu0 %458
    %v461 = vmul.f32 %v459, %v147
    %v462 = vadd.f32 %v456, %v461
    %463 = vset.pattern.permute.xlu0 11
    %464 = vperm.xlu0 %463, %v444
    %v465 = vpop.permute.xlu0 %464
    %v467 = vmul.f32 %v465, %v151
    %v468 = vadd.f32 %v462, %v467
    %v470 = vrot.slane %v468, 6
    %v472 = vadd.f32 %v133, %v470
    %v473 = vxor.u32 %v472, 2147483648
    %v474 = vmul.f32 %v473, 1.442695
    %v475 = vpow.pop %v474
    %v476 = vadd.f32 %v475, 1.0
    %v477 = vrcp.pop %v476
    %v478 = vmul.f32 1.0, %v477
    %v479 = vadd.f32 %v468, %v172
    %v481 = vrot.slane %v479, 6
    %482 = vrot.lane.b32.xlu0 %v481, 120
    %v483 = vpop.permute.xlu0 %482
    %v485 = vmul.f32 %v478, %v483
    %487 = vrot.lane.b32.xlu0 %v485, 8
    %v488 = vpop.permute.xlu0 %487
    %v490 = vadd.f32 %v133, %v488
    %v491 = vtanh.pop %v490
    %v493 = vrot.slane %v491, 2
    %v495 = vsub.f32 %v444, %v493
    %v497 = vrot.slane %v495, 6
    %498 = vrot.lane.b32.xlu0 %v497, 124
    %v499 = vpop.permute.xlu0 %498
    %v501 = vmul.f32 %v478, %v499
    %503 = vrot.lane.b32.xlu0 %v501, 4
    %v504 = vpop.permute.xlu0 %503
    %v506 = vadd.f32 %v491, %v504
    %508 = vset.pattern.permute.xlu0 8
    %509 = vperm.xlu0 %508, %v506
    %v510 = vpop.permute.xlu0 %509
    %v512 = vmul.f32 %v510, %v139
    %513 = vset.pattern.permute.xlu0 9
    %514 = vperm.xlu0 %513, %v506
    %v515 = vpop.permute.xlu0 %514
    %v517 = vmul.f32 %v515, %v143
    %v518 = vadd.f32 %v512, %v517
    %519 = vset.pattern.permute.xlu0 10
    %520 = vperm.xlu0 %519, %v506
    %v521 = vpop.permute.xlu0 %520
    %v523 = vmul.f32 %v521, %v147
    %v524 = vadd.f32 %v518, %v523
    %525 = vset.pattern.permute.xlu0 11
    %526 = vperm.xlu0 %525, %v506
    %v527 = vpop.permute.xlu0 %526
    %v529 = vmul.f32 %v527, %v151
    %v530 = vadd.f32 %v524, %v529
    %v532 = vrot.slane %v530, 6
    %v534 = vadd.f32 %v133, %v532
    %v535 = vxor.u32 %v534, 2147483648
    %v536 = vmul.f32 %v535, 1.442695
    %v537 = vpow.pop %v536
    %v538 = vadd.f32 %v537, 1.0
    %v539 = vrcp.pop %v538
    %v540 = vmul.f32 1.0, %v539
    %v541 = vadd.f32 %v530, %v172
    %v543 = vrot.slane %v541, 6
    %544 = vrot.lane.b32.xlu0 %v543, 120
    %v545 = vpop.permute.xlu0 %544
    %v547 = vmul.f32 %v540, %v545
    %549 = vrot.lane.b32.xlu0 %v547, 8
    %v550 = vpop.permute.xlu0 %549
    %v552 = vadd.f32 %v133, %v550
    %v553 = vtanh.pop %v552
    %v555 = vrot.slane %v553, 2
    %v557 = vsub.f32 %v506, %v555
    %v559 = vrot.slane %v557, 6
    %560 = vrot.lane.b32.xlu0 %v559, 124
    %v561 = vpop.permute.xlu0 %560
    %v563 = vmul.f32 %v540, %v561
    %565 = vrot.lane.b32.xlu0 %v563, 4
    %v566 = vpop.permute.xlu0 %565
    %v568 = vadd.f32 %v553, %v566
    %570 = vset.pattern.permute.xlu0 8
    %571 = vperm.xlu0 %570, %v568
    %v572 = vpop.permute.xlu0 %571
    %v574 = vmul.f32 %v572, %v139
    %575 = vset.pattern.permute.xlu0 9
    %576 = vperm.xlu0 %575, %v568
    %v577 = vpop.permute.xlu0 %576
    %v579 = vmul.f32 %v577, %v143
    %v580 = vadd.f32 %v574, %v579
    %581 = vset.pattern.permute.xlu0 10
    %582 = vperm.xlu0 %581, %v568
    %v583 = vpop.permute.xlu0 %582
    %v585 = vmul.f32 %v583, %v147
    %v586 = vadd.f32 %v580, %v585
    %587 = vset.pattern.permute.xlu0 11
    %588 = vperm.xlu0 %587, %v568
    %v589 = vpop.permute.xlu0 %588
    %v591 = vmul.f32 %v589, %v151
    %v592 = vadd.f32 %v586, %v591
    %v594 = vrot.slane %v592, 6
    %v596 = vadd.f32 %v133, %v594
    %v597 = vxor.u32 %v596, 2147483648
    %v598 = vmul.f32 %v597, 1.442695
    %v599 = vpow.pop %v598
    %v600 = vadd.f32 %v599, 1.0
    %v601 = vrcp.pop %v600
    %v602 = vmul.f32 1.0, %v601
    %v603 = vadd.f32 %v592, %v172
    %v605 = vrot.slane %v603, 6
    %606 = vrot.lane.b32.xlu0 %v605, 120
    %v607 = vpop.permute.xlu0 %606
    %v609 = vmul.f32 %v602, %v607
    %611 = vrot.lane.b32.xlu0 %v609, 8
    %v612 = vpop.permute.xlu0 %611
    %v614 = vadd.f32 %v133, %v612
    %v615 = vtanh.pop %v614
    %v617 = vrot.slane %v615, 2
    %v619 = vsub.f32 %v568, %v617
    %v621 = vrot.slane %v619, 6
    %622 = vrot.lane.b32.xlu0 %v621, 124
    %v623 = vpop.permute.xlu0 %622
    %v625 = vmul.f32 %v602, %v623
    %627 = vrot.lane.b32.xlu0 %v625, 4
    %v628 = vpop.permute.xlu0 %627
    %v630 = vadd.f32 %v615, %v628
    %v631 = vrot.slane %v258, 1
    %v633 = vrot.slane %v320, 2
    %v635 = vrot.slane %v382, 3
    %v637 = vrot.slane %v444, 4
    %v639 = vrot.slane %v506, 5
    %v641 = vrot.slane %v568, 6
    %v644 = vrot.slane %v630, 7
    %v646 = vrot.slane %v196, 1
    %v648 = vrot.slane %v258, 2
    %v650 = vrot.slane %v320, 3
    %v652 = vrot.slane %v382, 4
    %v654 = vrot.slane %v444, 5
    %v656 = vrot.slane %v506, 6
    %v658 = vrot.slane %v568, 7
    %vm660 = vcmask 1040384
    %v661 = vsel %vm660, %v196, %v631
    %vm662 = vcmask 1041408
    %v663 = vsel %vm662, %v661, %v633
    %vm664 = vcmask 1042432
    %v665 = vsel %vm664, %v663, %v635
    %v666 = vsel %vm57, %v665, %v637
    %vm667 = vcmask 1044480
    %v668 = vsel %vm667, %v666, %v639
    %vm669 = vcmask 1045504
    %v670 = vsel %vm669, %v668, %v641
    %vm671 = vcmask 1046528
    %v672 = vsel %vm671, %v670, %v644
    %v673 = vsel %vm660, %v646, %v648
    %v674 = vsel %vm662, %v673, %v650
    %v675 = vsel %vm664, %v674, %v652
    %v676 = vsel %vm57, %v675, %v654
    %v677 = vsel %vm667, %v676, %v656
    %v678 = vsel %vm669, %v677, %v658
    %v679 = vsel %vm671, %v678, %v630
    %v680 = vlaneseq
    %v681 = vshrl.u32 %v680, 7
    %v682 = vsub.s32 0, %v681
    %v683 = vrot.slane %v27, %v682
    %686 = vrot.lane.b32.xlu0 %v672, 120
    %v687 = vpop.permute.xlu0 %686
    %688 = vrot.lane.b32.xlu0 %v679, 120
    %v689 = vpop.permute.xlu0 %688
    %v690 = vsel %vm50, %v687, 0
    %v692 = vsel %vm50, %v689, 0
    %v695 = vsel %vm57, %v24, 0
    %697 = vmatprep.subr.mxu0 0.0
    %698 = vmatpush1.msra.mxu0 %v695
    %699 = vmatprep.subr.mxu0 0.0
    %700 = vmatpush1.msra.mxu0 0.0
    %701 = vmatprep.subr.mxu0 0.0
    %702 = vmatpush1.msra.mxu0 0.0
    %703 = vmatprep.subr.mxu0 0.0
    %704 = vmatpush1.msra.mxu0 0.0
    %705 = vmatprep.subr.mxu0 0.0
    %706 = vmatpush1.msra.mxu0 0.0
    %707 = vmatprep.subr.mxu0 0.0
    %708 = vmatpush1.msra.mxu0 0.0
    %709 = vmatprep.subr.mxu0 0.0
    %710 = vmatpush1.msra.mxu0 0.0
    %711 = vmatprep.subr.mxu0 0.0
    %712 = vmatpush1.msra.mxu0 0.0
    %713 = vmatprep.subr.mxu0 0.0
    %714 = vmatpush1.msra.mxu0 0.0
    %715 = vmatprep.subr.mxu0 0.0
    %716 = vmatpush1.msra.mxu0 0.0
    %717 = vmatprep.subr.mxu0 0.0
    %718 = vmatpush1.msra.mxu0 0.0
    %719 = vmatprep.subr.mxu0 0.0
    %720 = vmatpush1.msra.mxu0 0.0
    %721 = vmatprep.subr.mxu0 0.0
    %722 = vmatpush1.msra.mxu0 0.0
    %723 = vmatprep.subr.mxu0 0.0
    %724 = vmatpush1.msra.mxu0 0.0
    %725 = vmatprep.subr.mxu0 0.0
    %726 = vmatpush1.msra.mxu0 0.0
    %727 = vmatprep.subr.mxu0 0.0
    %728 = vmatpush1.msra.mxu0 0.0
    %729 = vmatprep.subr.mxu0 0.0
    %730 = vmatpush1.msra.mxu0 0.0
    %731 = vmatprep.subr.mxu0 0.0
    %732 = vmatpush1.msra.mxu0 0.0
    %733 = vmatprep.subr.mxu0 0.0
    %734 = vmatpush1.msra.mxu0 0.0
    %735 = vmatprep.subr.mxu0 0.0
    %736 = vmatpush1.msra.mxu0 0.0
    %737 = vmatprep.subr.mxu0 0.0
    %738 = vmatpush1.msra.mxu0 0.0
    %739 = vmatprep.subr.mxu0 0.0
    %740 = vmatpush1.msra.mxu0 0.0
    %741 = vmatprep.subr.mxu0 0.0
    %742 = vmatpush1.msra.mxu0 0.0
    %743 = vmatprep.subr.mxu0 0.0
    %744 = vmatpush1.msra.mxu0 0.0
    %745 = vmatprep.subr.mxu0 0.0
    %746 = vmatpush1.msra.mxu0 0.0
    %747 = vmatprep.subr.mxu0 0.0
    %748 = vmatpush1.msra.mxu0 0.0
    %749 = vmatprep.subr.mxu0 0.0
    %750 = vmatpush1.msra.mxu0 0.0
    %751 = vmatprep.subr.mxu0 0.0
    %752 = vmatpush1.msra.mxu0 0.0
    %753 = vmatprep.subr.mxu0 0.0
    %754 = vmatpush1.msra.mxu0 0.0
    %755 = vmatprep.subr.mxu0 0.0
    %756 = vmatpush1.msra.mxu0 0.0
    %757 = vmatprep.subr.mxu0 0.0
    %758 = vmatpush1.msra.mxu0 0.0
    %759 = vmatprep.subr.mxu0 0.0
    %760 = vmatpush1.msra.mxu0 0.0
    %761 = vmatprep.mubr.f32.mxu0 0.0
    %762 = vmatmul.mubr.f32.gmra.mrb[0].mxu0 %v690
    %v763 = vpop.f32.mrb[0].mxu0
    %v764 = vadd.f32 %v683, %v763
    %v765 = vpop.f32.mrb[0].mxu0
    %766 = vmatprep.mubr.f32.mxu0 0.0
    %767 = vmatmul.mubr.f32.gmra.mrb[0].mxu0 %v692
    %v768 = vpop.f32.mrb[0].mxu0
    %v769 = vadd.f32 %v683, %v768
    %v770 = vpop.f32.mrb[0].mxu0
    %771 = vdwg.mxu0
    %772 = vst.msk [vmem:[%s1] sm:$0xff] %vm50, %v764
    %773 = vst.msk [vmem:[%s1 + $0x8] sm:$0xff] %vm50, %v769
    // Predicated region
    $region10: #{tpu_custom_call.1} parent=1 // pred_check
      _
    $region11: #{tpu_custom_call.1} parent=1 // pred_check_branch
      %775 = sbr.rel (0) target = $region13
    $region12: #{tpu_custom_call.1} parent=1 // pred_region
      _
    $region13: #{tpu_custom_call.1} parent=1 // pred_fallthru
      _
    // Predicated region
    $region14: #{tpu_custom_call.1} parent=1 // pred_check
      _
    $region15: #{tpu_custom_call.1} parent=1 // pred_check_branch
      %777 = sbr.rel (0) target = $region17
    $region16: #{tpu_custom_call.1} parent=1 // pred_region
      _
    $region17: #{tpu_custom_call.1} parent=1 // pred_fallthru
      _
    %778 = vsyncpa [#allocation3], 1

</llo_original>
